<compile_context>
chip_gen: v7x
topology: tpu7x:2x2x1
jax: 0.10.0
libtpu: 0.0.40
codegen_flags: <defaults>
</compile_context>

<pallas_src>
import functools

import jax
import jax.numpy as jnp
from jax.experimental import pallas as pl
from jax.experimental.pallas import tpu as pltpu


_NEG_LARGE = -1e30  # additive mask for invalid sliding-window positions (f32 only)


def _round_up(x, m):
    return (x + m - 1) // m * m


def _fused_conv_kernel(x_ref, w_ref, b_ref, lim_ref, o_ref, *, fs_max, l_out):
    """Fused conv (all filter sizes) + masked max-pool + bias + ReLU.

    x_ref:   (BB, L_ext, D)      bf16 hidden states (zero-padded along time)
    w_ref:   (fs_max, D, F_pad)  bf16 per-shift weights (all branches, lane-padded)
    b_ref:   (1, F_pad)          f32 biases
    lim_ref: (1, F_pad)          int32 per-column count of valid window positions
    o_ref:   (BB, 1, F_pad)      f32 pooled output block (lane-dense)
    """
    bb = x_ref.shape[0]
    d = x_ref.shape[2]
    f_pad = w_ref.shape[2]

    x = x_ref[...]  # bf16; shifts are sliced directly, no f32 round trip.

    # Per-shift shallow matmuls accumulated in f32 (no im2col blow-up).
    acc = jnp.zeros((bb * l_out, f_pad), jnp.float32)
    for k in range(fs_max):                       # static unroll; fs_max is tiny
        xs = x[:, k:k + l_out, :].reshape(bb * l_out, d)       # bf16, tall M
        acc = acc + jax.lax.dot_general(
            xs, w_ref[k],
            dimension_numbers=(((1,), (0,)), ((), ())),
            preferred_element_type=jnp.float32)

    scores = acc.reshape(bb, l_out, f_pad)                      # f32

    # Branch-dependent invalid window positions: mask built in-kernel from the
    # (1, F_pad) limit row — cheap VPU work, no (l_out, F_pad) mask DMA.
    t_idx = jax.lax.broadcasted_iota(jnp.int32, (l_out, f_pad), 0)
    mask = jnp.where(t_idx < lim_ref[...], 0.0, _NEG_LARGE).astype(jnp.float32)

    pooled = jnp.max(scores + mask[None, :, :], axis=1)         # (BB, F_pad)

    # bias + ReLU commuted past the max (exact: ReLU monotone, bias const over t).
    out = jnp.maximum(pooled + b_ref[...], 0.0)
    o_ref[...] = out[:, None, :].astype(o_ref.dtype)


def pack_conv_params(weights, biases, filter_sizes, seq_len):
    """Fold all Conv2d branches into one bf16 weight slab + bias + limit row.

    weights[i]: (F, 1, fs_i, D)  -- PyTorch Conv2d weight layout
    biases[i]:  (F,)
    Returns (w_packed, b_packed, limits, fs_max, l_out, f_total, f_pad).
    """
    fs_max = max(filter_sizes)
    F = weights[0].shape[0]
    D = weights[0].shape[3]
    f_total = F * len(filter_sizes)
    # NOTE: at production F, pad to multiples of 256 on v6e/v7x (2x256^2 MXU);
    # 128 kept here because the toy f_total is tiny.
    f_pad = _round_up(f_total, 128)
    l_out = _round_up(seq_len, 8)          # sublane-aligned window positions

    w_cols, b_cols, limit_cols = [], [], []
    for w_t, b_t, fs in zip(weights, biases, filter_sizes):
        w = jnp.transpose(w_t[:, 0, :, :], (1, 2, 0))            # (fs, D, F)
        w = jnp.pad(w, ((0, fs_max - fs), (0, 0), (0, 0)))        # (fs_max, D, F)
        w_cols.append(w)
        b_cols.append(b_t.astype(jnp.float32))
        # valid window positions for this branch: t < seq_len - fs + 1
        limit_cols.append(jnp.full((F,), seq_len - fs + 1, jnp.int32))

    w_all = jnp.concatenate(w_cols, axis=-1)                      # (fs_max, D, f_total)
    w_all = jnp.pad(w_all, ((0, 0), (0, 0), (0, f_pad - f_total)))
    w_packed = w_all.astype(jnp.bfloat16)                         # (fs_max, D, f_pad)

    b_all = jnp.concatenate(b_cols)
    b_packed = jnp.pad(b_all, (0, f_pad - f_total)).reshape(1, f_pad).astype(jnp.float32)

    limits = jnp.concatenate(limit_cols)
    limits = jnp.pad(limits, (0, f_pad - f_total), constant_values=l_out)
    limits = limits.reshape(1, f_pad)                             # padded cols harmless

    return w_packed, b_packed, limits, fs_max, l_out, f_total, f_pad


def convolution_forward(hidden_states, w_packed, b_packed, limits,
                        *, fs_max, l_out, f_total, f_pad,
                        batch_block=8, vmem_limit_bytes=None):
    """hidden_states: (B, L, D) -> (B, f_total) pooled conv features."""
    B, L, D = hidden_states.shape

    # Pick a batch block: as fat as allowed, but >=2 grid steps whenever B >= 2 so
    # both v7x TensorCores get work under dimension_semantics=("parallel",).
    bb = min(batch_block, B)
    if B >= 2 and -(-B // bb) < 2:
        bb = max(1, (B + 1) // 2)
    b_pad = _round_up(B, bb)
    l_ext = _round_up(l_out + fs_max - 1, 8)

    # bf16 storage/DMA; zero-pad batch to a block multiple and time for the shifts.
    x = hidden_states.astype(jnp.bfloat16)
    x = jnp.pad(x, ((0, b_pad - B), (0, l_ext - L), (0, 0)))
    # NOTE: toy D=32 wastes lanes; production d_model (512/768) is lane-dense.

    kernel = functools.partial(_fused_conv_kernel, fs_max=fs_max, l_out=l_out)
    resident = pl.Buffered(1)   # grid-invariant inputs: no pointless double-buffer

    out = pl.pallas_call(
        kernel,
        out_shape=jax.ShapeDtypeStruct((b_pad, 1, f_pad), jnp.float32),
        grid=(b_pad // bb,),
        in_specs=[
            pl.BlockSpec((bb, l_ext, D), lambda b: (b, 0, 0)),           # x block
            pl.BlockSpec((fs_max, D, f_pad), lambda b: (0, 0, 0),
                         pipeline_mode=resident),                        # weights
            pl.BlockSpec((1, f_pad), lambda b: (0, 0),
                         pipeline_mode=resident),                        # bias
            pl.BlockSpec((1, f_pad), lambda b: (0, 0),
                         pipeline_mode=resident),                        # limits
        ],
        out_specs=pl.BlockSpec((bb, 1, f_pad), lambda b: (b, 0, 0)),
        compiler_params=pltpu.CompilerParams(
            dimension_semantics=("parallel",),
            # For production shapes set this per generation (v5e default scoped
            # VMEM is 16 MiB; v7x physical is 64 MiB) and/or shrink batch_block.
            vmem_limit_bytes=vmem_limit_bytes,
        ),
    )(x, w_packed, b_packed, limits)

    return out[:B, 0, :f_total]


if __name__ == "__main__":
    # Small, deterministic configuration.
    B = 2            # batch
    L = 16           # max_len (sequence length)
    D = 32           # d_model of the (stubbed) T5 encoder
    F = 8            # n_filters
    filter_sizes = [2, 3, 4]
    VOCAB = 64

    key = jax.random.PRNGKey(0)
    k_tok, k_emb, *k_params = jax.random.split(key, 2 + 2 * len(filter_sizes))

    # --- glue standing in for lm_model(batch).last_hidden_state ---
    batch_tokens = jax.random.randint(k_tok, (B, L), 0, VOCAB, dtype=jnp.int32)
    emb_table = jax.random.normal(k_emb, (VOCAB, D), dtype=jnp.float32) * 0.1
    hidden_states = emb_table[batch_tokens]     # (B, L, D)

    # --- deterministic Conv2d parameters in PyTorch layout (F, 1, fs, D) ---
    weights, biases = [], []
    for i, fs in enumerate(filter_sizes):
        weights.append(jax.random.normal(k_params[2 * i], (F, 1, fs, D), jnp.float32) * 0.05)
        biases.append(jax.random.normal(k_params[2 * i + 1], (F,), jnp.float32) * 0.05)

    (w_packed, b_packed, limits,
     fs_max, l_out, f_total, f_pad) = pack_conv_params(weights, biases, filter_sizes, L)

    out = convolution_forward(hidden_states, w_packed, b_packed, limits,
                              fs_max=fs_max, l_out=l_out, f_total=f_total, f_pad=f_pad)
    out = jax.block_until_ready(out)
    assert out.shape == (B, F * len(filter_sizes)), out.shape

    # --- plain-JAX reference (branch-by-branch, exactly the PyTorch ordering) ---
    x_bf = hidden_states.astype(jnp.bfloat16).astype(jnp.float32)
    refs = []
    for w_t, b_t, fs in zip(weights, biases, filter_sizes):
        w = jnp.transpose(w_t[:, 0, :, :], (1, 2, 0))  # (fs, D, F)
        w = w.astype(jnp.bfloat16).astype(jnp.float32)
        T = L - fs + 1
        conv = jnp.zeros((B, T, F), jnp.float32)
        for k in range(fs):
            conv = conv + jnp.einsum("btd,df->btf", x_bf[:, k:k + T, :], w[k])
        act = jnp.maximum(conv + b_t[None, None, :], 0.0)   # bias + ReLU
        refs.append(jnp.max(act, axis=1))                   # max-pool over time
    ref = jnp.concatenate(refs, axis=1)

    assert jnp.allclose(out, ref, rtol=1e-2, atol=1e-3), float(jnp.max(jnp.abs(out - ref)))
    print("KERNEL_OK")
</pallas_src>

<mosaic_0001>
module attributes {stable_mosaic.version = 11 : i64} {
  func.func @_fused_conv_kernel(%arg0: i32, %arg1: memref<1x24x32xbf16, #tpu.memory_space<vmem>>, %arg2: memref<4x32x128xbf16, #tpu.memory_space<vmem>>, %arg3: memref<1x128xf32, #tpu.memory_space<vmem>>, %arg4: memref<1x128xi32, #tpu.memory_space<vmem>>, %arg5: memref<1x1x128xf32, #tpu.memory_space<vmem>>) attributes {dimension_semantics = [#tpu.dimension_semantics<parallel>], iteration_bounds = array<i64: 2>, scalar_prefetch = 0 : i64, scratch_operands = 0 : i64, tpu.core_type = #tpu.core_type<tc>, window_params = [{transform_indices = @transform_0, window_bounds = array<i64: 1, 24, 32>}, {pipeline_mode = #tpu.pipeline_mode<synchronous>, transform_indices = @transform_1, window_bounds = array<i64: 4, 32, 128>}, {pipeline_mode = #tpu.pipeline_mode<synchronous>, transform_indices = @transform_2, window_bounds = array<i64: 1, 128>}, {pipeline_mode = #tpu.pipeline_mode<synchronous>, transform_indices = @transform_3, window_bounds = array<i64: 1, 128>}, {transform_indices = @transform_4, window_bounds = array<i64: 1, 1, 128>}]} {
    %c0 = arith.constant 0 : index
    %c0_0 = arith.constant 0 : index
    %c0_1 = arith.constant 0 : index
    %0 = vector.load %arg1[%c0, %c0_0, %c0_1] : memref<1x24x32xbf16, #tpu.memory_space<vmem>>, vector<1x24x32xbf16>
    %cst = arith.constant 0.000000e+00 : f32
    %1 = vector.broadcast %cst : f32 to vector<16x128xf32>
    %2 = vector.extract_strided_slice %0 {offsets = [0, 0, 0], sizes = [1, 16, 32], strides = [1, 1, 1]} : vector<1x24x32xbf16> to vector<1x16x32xbf16>
    %3 = vector.shape_cast %2 : vector<1x16x32xbf16> to vector<16x32xbf16>
    %c0_2 = arith.constant 0 : index
    %c0_3 = arith.constant 0 : index
    %c0_4 = arith.constant 0 : index
    %4 = vector.load %arg2[%c0_2, %c0_3, %c0_4] : memref<4x32x128xbf16, #tpu.memory_space<vmem>>, vector<1x32x128xbf16>
    %5 = vector.shape_cast %4 : vector<1x32x128xbf16> to vector<32x128xbf16>
    %cst_5 = arith.constant dense<0.000000e+00> : vector<16x128xf32>
    %6 = tpu.matmul %3, %5, %cst_5 {dimension_numbers = #tpu.dot_dimension_numbers<[1], [0], [0], [1], [0, 0, 1, 1], [], []>} : vector<16x32xbf16>, vector<32x128xbf16>, vector<16x128xf32> -> vector<16x128xf32>
    %7 = arith.addf %1, %6 : vector<16x128xf32>
    %8 = vector.extract_strided_slice %0 {offsets = [0, 1, 0], sizes = [1, 16, 32], strides = [1, 1, 1]} : vector<1x24x32xbf16> to vector<1x16x32xbf16>
    %9 = vector.shape_cast %8 : vector<1x16x32xbf16> to vector<16x32xbf16>
    %c1 = arith.constant 1 : index
    %c0_6 = arith.constant 0 : index
    %c0_7 = arith.constant 0 : index
    %10 = vector.load %arg2[%c1, %c0_6, %c0_7] : memref<4x32x128xbf16, #tpu.memory_space<vmem>>, vector<1x32x128xbf16>
    %11 = vector.shape_cast %10 : vector<1x32x128xbf16> to vector<32x128xbf16>
    %cst_8 = arith.constant dense<0.000000e+00> : vector<16x128xf32>
    %12 = tpu.matmul %9, %11, %cst_8 {dimension_numbers = #tpu.dot_dimension_numbers<[1], [0], [0], [1], [0, 0, 1, 1], [], []>} : vector<16x32xbf16>, vector<32x128xbf16>, vector<16x128xf32> -> vector<16x128xf32>
    %13 = arith.addf %7, %12 : vector<16x128xf32>
    %14 = vector.extract_strided_slice %0 {offsets = [0, 2, 0], sizes = [1, 16, 32], strides = [1, 1, 1]} : vector<1x24x32xbf16> to vector<1x16x32xbf16>
    %15 = vector.shape_cast %14 : vector<1x16x32xbf16> to vector<16x32xbf16>
    %c2 = arith.constant 2 : index
    %c0_9 = arith.constant 0 : index
    %c0_10 = arith.constant 0 : index
    %16 = vector.load %arg2[%c2, %c0_9, %c0_10] : memref<4x32x128xbf16, #tpu.memory_space<vmem>>, vector<1x32x128xbf16>
    %17 = vector.shape_cast %16 : vector<1x32x128xbf16> to vector<32x128xbf16>
    %cst_11 = arith.constant dense<0.000000e+00> : vector<16x128xf32>
    %18 = tpu.matmul %15, %17, %cst_11 {dimension_numbers = #tpu.dot_dimension_numbers<[1], [0], [0], [1], [0, 0, 1, 1], [], []>} : vector<16x32xbf16>, vector<32x128xbf16>, vector<16x128xf32> -> vector<16x128xf32>
    %19 = arith.addf %13, %18 : vector<16x128xf32>
    %20 = vector.extract_strided_slice %0 {offsets = [0, 3, 0], sizes = [1, 16, 32], strides = [1, 1, 1]} : vector<1x24x32xbf16> to vector<1x16x32xbf16>
    %21 = vector.shape_cast %20 : vector<1x16x32xbf16> to vector<16x32xbf16>
    %c3 = arith.constant 3 : index
    %c0_12 = arith.constant 0 : index
    %c0_13 = arith.constant 0 : index
    %22 = vector.load %arg2[%c3, %c0_12, %c0_13] : memref<4x32x128xbf16, #tpu.memory_space<vmem>>, vector<1x32x128xbf16>
    %23 = vector.shape_cast %22 : vector<1x32x128xbf16> to vector<32x128xbf16>
    %cst_14 = arith.constant dense<0.000000e+00> : vector<16x128xf32>
    %24 = tpu.matmul %21, %23, %cst_14 {dimension_numbers = #tpu.dot_dimension_numbers<[1], [0], [0], [1], [0, 0, 1, 1], [], []>} : vector<16x32xbf16>, vector<32x128xbf16>, vector<16x128xf32> -> vector<16x128xf32>
    %25 = arith.addf %19, %24 : vector<16x128xf32>
    %26 = vector.shape_cast %25 : vector<16x128xf32> to vector<1x16x128xf32>
    %27 = tpu.iota {dimensions = array<i32: 0>} : vector<16x128xi32>
    %c0_15 = arith.constant 0 : index
    %c0_16 = arith.constant 0 : index
    %28 = vector.load %arg4[%c0_15, %c0_16] : memref<1x128xi32, #tpu.memory_space<vmem>>, vector<1x128xi32>
    %29 = vector.broadcast %28 : vector<1x128xi32> to vector<16x128xi32>
    %30 = arith.cmpi slt, %27, %29 : vector<16x128xi32>
    %cst_17 = arith.constant 0.000000e+00 : f32
    %cst_18 = arith.constant -1.000000e+30 : f32
    %31 = vector.broadcast %cst_17 : f32 to vector<16x128xf32>
    %32 = vector.broadcast %cst_18 : f32 to vector<16x128xf32>
    %33 = arith.select %30, %31, %32 : vector<16x128xi1>, vector<16x128xf32>
    %34 = vector.shape_cast %33 : vector<16x128xf32> to vector<1x16x128xf32>
    %35 = arith.addf %26, %34 : vector<1x16x128xf32>
    %cst_19 = arith.constant dense<0xFF800000> : vector<1x128xf32>
    %36 = vector.multi_reduction <maximumf>, %35, %cst_19 [1] : vector<1x16x128xf32> to vector<1x128xf32>
    %c0_20 = arith.constant 0 : index
    %c0_21 = arith.constant 0 : index
    %37 = vector.load %arg3[%c0_20, %c0_21] : memref<1x128xf32, #tpu.memory_space<vmem>>, vector<1x128xf32>
    %38 = arith.addf %36, %37 : vector<1x128xf32>
    %cst_22 = arith.constant 0.000000e+00 : f32
    %39 = vector.broadcast %cst_22 : f32 to vector<1x128xf32>
    %40 = arith.maximumf %38, %39 : vector<1x128xf32>
    %41 = vector.shape_cast %40 : vector<1x128xf32> to vector<1x1x128xf32>
    %c0_23 = arith.constant 0 : index
    %c0_24 = arith.constant 0 : index
    %c0_25 = arith.constant 0 : index
    %42 = vector.load %arg5[%c0_23, %c0_24, %c0_25] : memref<1x1x128xf32, #tpu.memory_space<vmem>>, vector<1x1x128xf32>
    tpu.vector_store %arg5[%c0_23, %c0_24, %c0_25], %41 {strides = array<i32>} : memref<1x1x128xf32, #tpu.memory_space<vmem>>, vector<1x1x128xf32>,
    return
  }
  func.func @transform_0(%arg0: i32) -> (i32, i32, i32) {
    %c0_i32 = arith.constant 0 : i32
    %c0_i32_0 = arith.constant 0 : i32
    %c0_i32_1 = arith.constant 0 : i32
    return %arg0, %c0_i32, %c0_i32_0 : i32, i32, i32
  }
  func.func @transform_1(%arg0: i32) -> (i32, i32, i32) {
    %c0_i32 = arith.constant 0 : i32
    %c0_i32_0 = arith.constant 0 : i32
    %c0_i32_1 = arith.constant 0 : i32
    %c0_i32_2 = arith.constant 0 : i32
    return %c0_i32, %c0_i32_0, %c0_i32_1 : i32, i32, i32
  }
  func.func @transform_2(%arg0: i32) -> (i32, i32) {
    %c0_i32 = arith.constant 0 : i32
    %c0_i32_0 = arith.constant 0 : i32
    %c0_i32_1 = arith.constant 0 : i32
    return %c0_i32, %c0_i32_0 : i32, i32
  }
  func.func @transform_3(%arg0: i32) -> (i32, i32) {
    %c0_i32 = arith.constant 0 : i32
    %c0_i32_0 = arith.constant 0 : i32
    %c0_i32_1 = arith.constant 0 : i32
    return %c0_i32, %c0_i32_0 : i32, i32
  }
  func.func @transform_4(%arg0: i32) -> (i32, i32, i32) {
    %c0_i32 = arith.constant 0 : i32
    %c0_i32_0 = arith.constant 0 : i32
    %c0_i32_1 = arith.constant 0 : i32
    return %arg0, %c0_i32, %c0_i32_0 : i32, i32, i32
  }
}

</mosaic_0001>

<llo_original>
// kernel: tpu_custom_call.1
$region0: #{tpu_custom_call.1}
  #allocation0 [shape = 'u32[]', space=smem, size = 0x4, offset = 0x4, fixed_abs, tag = 'smem constant byte address 0x4 - core index']
  #allocation1 [shape = 'u32[144,128]{1,0:T(1,128)}', space=vmem, size = 0x12000, scoped, tag = 'internal scratch']
  %s0 = inlined_call_operand.hbm [shape: bf16[2,24,32], index: 0, kind: input, shape index: {}]
  %s1 = inlined_call_operand.hbm [shape: bf16[4,32,128], index: 1, kind: input, shape index: {}]
  %s2 = inlined_call_operand.vmem [shape: f32[1,128], index: 2, kind: input, shape index: {}]
  %s3 = inlined_call_operand.vmem [shape: s32[1,128], index: 3, kind: input, shape index: {}]
  %s4 = inlined_call_operand.hbm [shape: f32[2,1,128], index: 4, kind: output, shape index: {}]
  %s5 = sld [smem:[#allocation0]]
  $region57: #{tpu_custom_call.1} parent=0
    _
  %s7 = ssub.s32 1, %s5
  %s8 = scalar_select 0, %s7, %s5
  $region1: #{tpu_custom_call.1} parent=0
    #allocation2 [shape = 'u8[12288]{0}', space=vmem, size = 0x3000, scoped, tag = 'input window, operand 0']
    #allocation3 [shape = 's32[2]{0}', space=sflag, size = 0x8, scoped, tag = 'scoped memory for tpu_custom_call.1']
    #allocation4 [shape = 's32[2]{0}', space=sflag, size = 0x8, scoped, tag = 'scoped memory for tpu_custom_call.1']
    #allocation5 [shape = 'u8[32768]{0}', space=vmem, size = 0x8000, scoped, tag = 'input window, operand 1, single buffered']
    #allocation6 [shape = 's32[1]{0}', space=sflag, size = 0x4, scoped, tag = 'scoped memory for tpu_custom_call.1']
    #allocation7 [shape = 'u8[1024]{0}', space=vmem, size = 0x400, scoped, tag = 'output window, operand 0']
    %9 = vsyncpa [#allocation3], 0
    %s10 = scalar_lea.sflag [#allocation3], 1
    %11 = vsyncpa %s10, 0
    %12 = vsyncpa [#allocation6], 0
    %13 = vsyncpa [#allocation4], 0
    %s14 = scalar_lea.sflag [#allocation4], 1
    %15 = vsyncpa %s14, 0
    loop: start=0, step=1, limit=4
    $region2: #{tpu_custom_call.1} parent=1 // loop_pre_header
      _
    $region3: #{tpu_custom_call.1} parent=1 // loop_header
      %s17 = sphi 0, %s21
      %p18 = scmp.ge.s32.totalorder %s17, 4
      %s27 = sphi 0, %s29
      %s30 = sphi 0, %s27
      %s31 = sphi 0, %s30
      %s47 = sphi 0, %s31
      %s51 = sphi 0, %s51
      %s53 = sphi 0, %s51
      %s54 = sphi 0, %s53
      %s68 = sphi 0, %s54
      %s72 = sphi 0, %s72
      %s74 = sphi 0, %s72
      %s75 = sphi 0, %s74
      %s89 = sphi 0, %s75
      %s93 = sphi 0, %s93
      %s95 = sphi 0, %s93
      %s96 = sphi 0, %s95
      %s110 = sphi 0, %s96
      %s116 = sphi 0, %s118
      %s119 = sphi 0, %s116
      %s120 = sphi 0, %s119
      %s136 = sphi 0, %s120
    $region4: #{tpu_custom_call.1} parent=1 // loop_header_branch
      %20 = sbr.rel (%p18) target = $region8
    $region5: #{tpu_custom_call.1} parent=1 // loop_body
      %s22 = ssub.s32 %s17, 1
      %s23 = ssub.s32 %s17, 2
      %s24 = sadd.s32 %s17, 1
      %s25 = ssub.s32 %s17, %s24
      %p26 = scmp.eq.s32.totalorder %s25, 0
      %s28 = sadd.s32 %s27, 1
      %s29 = scalar_select %p26, %s27, %s28
      %p32 = pneg %p26
      %p33 = scmp.eq.s32.totalorder %s17, 1
      %p34 = por %p32, %p33
      %p35 = scmp.ne.s32.totalorder %s27, %s30
      %p36 = scmp.eq.s32.totalorder %s17, 0
      %p37 = por %p35, %p36
      %p38 = scmp.ne.s32.totalorder %s27, %s30
      %p39 = scmp.eq.s32.totalorder %s22, 1
      %p40 = por %p38, %p39
      %p41 = scmp.ne.s32.totalorder %s30, %s31
      %p42 = scmp.eq.s32.totalorder %s22, 0
      %p43 = por %p41, %p42
      %p44 = scmp.ne.s32.totalorder %s30, %s31
      %p45 = scmp.eq.s32.totalorder %s23, 1
      %p46 = por %p44, %p45
      %p48 = scmp.ne.s32.totalorder %s31, %s47
      %p49 = scmp.eq.s32.totalorder %s23, 0
      %p50 = por %p48, %p49
      %s52 = sadd.s32 %s51, 1
      %p55 = scmp.eq.s32.totalorder %s17, 1
      %p56 = scmp.ne.s32.totalorder %s51, %s53
      %p57 = scmp.eq.s32.totalorder %s17, 0
      %p58 = por %p56, %p57
      %p59 = scmp.ne.s32.totalorder %s51, %s53
      %p60 = scmp.eq.s32.totalorder %s22, 1
      %p61 = por %p59, %p60
      %p62 = scmp.ne.s32.totalorder %s53, %s54
      %p63 = scmp.eq.s32.totalorder %s22, 0
      %p64 = por %p62, %p63
      %p65 = scmp.ne.s32.totalorder %s53, %s54
      %p66 = scmp.eq.s32.totalorder %s23, 1
      %p67 = por %p65, %p66
      %p69 = scmp.ne.s32.totalorder %s54, %s68
      %p70 = scmp.eq.s32.totalorder %s23, 0
      %p71 = por %p69, %p70
      %s73 = sadd.s32 %s72, 1
      %p76 = scmp.eq.s32.totalorder %s17, 1
      %p77 = scmp.ne.s32.totalorder %s72, %s74
      %p78 = scmp.eq.s32.totalorder %s17, 0
      %p79 = por %p77, %p78
      %p80 = scmp.ne.s32.totalorder %s72, %s74
      %p81 = scmp.eq.s32.totalorder %s22, 1
      %p82 = por %p80, %p81
      %p83 = scmp.ne.s32.totalorder %s74, %s75
      %p84 = scmp.eq.s32.totalorder %s22, 0
      %p85 = por %p83, %p84
      %p86 = scmp.ne.s32.totalorder %s74, %s75
      %p87 = scmp.eq.s32.totalorder %s23, 1
      %p88 = por %p86, %p87
      %p90 = scmp.ne.s32.totalorder %s75, %s89
      %p91 = scmp.eq.s32.totalorder %s23, 0
      %p92 = por %p90, %p91
      %s94 = sadd.s32 %s93, 1
      %p97 = scmp.eq.s32.totalorder %s17, 1
      %p98 = scmp.ne.s32.totalorder %s93, %s95
      %p99 = scmp.eq.s32.totalorder %s17, 0
      %p100 = por %p98, %p99
      %p101 = scmp.ne.s32.totalorder %s93, %s95
      %p102 = scmp.eq.s32.totalorder %s22, 1
      %p103 = por %p101, %p102
      %p104 = scmp.ne.s32.totalorder %s95, %s96
      %p105 = scmp.eq.s32.totalorder %s22, 0
      %p106 = por %p104, %p105
      %p107 = scmp.ne.s32.totalorder %s95, %s96
      %p108 = scmp.eq.s32.totalorder %s23, 1
      %p109 = por %p107, %p108
      %p111 = scmp.ne.s32.totalorder %s96, %s110
      %p112 = scmp.eq.s32.totalorder %s23, 0
      %p113 = por %p111, %p112
      %s114 = ssub.s32 %s17, %s24
      %p115 = scmp.eq.s32.totalorder %s114, 0
      %s117 = sadd.s32 %s116, 1
      %s118 = scalar_select %p115, %s116, %s117
      %p121 = pneg %p115
      %p122 = scmp.eq.s32.totalorder %s17, 1
      %p123 = por %p121, %p122
      %p124 = scmp.ne.s32.totalorder %s116, %s119
      %p125 = scmp.eq.s32.totalorder %s17, 0
      %p126 = por %p124, %p125
      %p127 = scmp.ne.s32.totalorder %s116, %s119
      %p128 = scmp.eq.s32.totalorder %s22, 1
      %p129 = por %p127, %p128
      %p130 = scmp.ne.s32.totalorder %s119, %s120
      %p131 = scmp.eq.s32.totalorder %s22, 0
      %p132 = por %p130, %p131
      %p133 = scmp.ne.s32.totalorder %s119, %s120
      %p134 = scmp.eq.s32.totalorder %s23, 1
      %p135 = por %p133, %p134
      %p137 = scmp.ne.s32.totalorder %s120, %s136
      %p138 = scmp.eq.s32.totalorder %s23, 0
      %p139 = por %p137, %p138
      %p140 = scmp.le.s32.totalorder 1, %s17
      %p141 = scmp.lt.s32.totalorder %s17, 3
      %p142 = pnand %p140, %p141
      %p143 = pneg %p142
      // Predicated region
      $region9: #{tpu_custom_call.1} parent=5 // pred_check
        _
      $region10: #{tpu_custom_call.1} parent=5 // pred_check_branch
        %145 = sbr.rel (%p142) target = $region12
      $region11: #{tpu_custom_call.1} parent=5 // pred_region
        %s146 = ssub.s32 %s17, 1
        // Predicated region
        $region13: #{tpu_custom_call.1} parent=11 // pred_check
          %p147 = pneg %p64
        $region14: #{tpu_custom_call.1} parent=11 // pred_check_branch
          %149 = sbr.rel (%p147) target = $region16
        $region15: #{tpu_custom_call.1} parent=11 // pred_region
          %s151 = ssub.s32 1024, 1024
          %152 = vsyncadd [#allocation6], %s151
          %s153 = sshll.u32 [#allocation5], 4
          %s154 = int_to_ptr.vmem [resolvable:$true] %s153
          %159 = dma.hbm_to_vmem [thread:$0]  %s1, 1024, %s154, [#allocation6], 64, 64, 4
        $region16: #{tpu_custom_call.1} parent=11 // pred_fallthru
          _
        // Predicated region
        $region17: #{tpu_custom_call.1} parent=11 // pred_check
          %p160 = pneg %p85
        $region18: #{tpu_custom_call.1} parent=11 // pred_check_branch
          %162 = sbr.rel (%p160) target = $region20
        $region19: #{tpu_custom_call.1} parent=11 // pred_region
          _
        $region20: #{tpu_custom_call.1} parent=11 // pred_fallthru
          _
        // Predicated region
        $region21: #{tpu_custom_call.1} parent=11 // pred_check
          %p163 = pneg %p106
        $region22: #{tpu_custom_call.1} parent=11 // pred_check_branch
          %165 = sbr.rel (%p163) target = $region24
        $region23: #{tpu_custom_call.1} parent=11 // pred_region
          _
        $region24: #{tpu_custom_call.1} parent=11 // pred_fallthru
          _
      $region12: #{tpu_custom_call.1} parent=5 // pred_fallthru
        _
      %p166 = scmp.lt.s32.totalorder %s17, 2
      // Predicated region
      $region25: #{tpu_custom_call.1} parent=5 // pred_check
        %p167 = pneg %p166
      $region26: #{tpu_custom_call.1} parent=5 // pred_check_branch
        %169 = sbr.rel (%p167) target = $region28
      $region27: #{tpu_custom_call.1} parent=5 // pred_region
        // Predicated region
        $region29: #{tpu_custom_call.1} parent=27 // pred_check
          %p170 = pneg %p37
        $region30: #{tpu_custom_call.1} parent=27 // pred_check_branch
          %172 = sbr.rel (%p170) target = $region32
        $region31: #{tpu_custom_call.1} parent=27 // pred_region
          %s173 = sand.u32 %s27, 1
          %s174 = scalar_lea.sflag [#allocation3], %s173
          %s175 = sand.u32 %s27, 1
          %s176 = smul.addr %s175, 12
          %s177 = scalar_lea.vmem [#allocation2], %s176
          %s179 = ssub.s32 192, 192
          %180 = vsyncadd %s174, %s179
          %s181 = smul.addr %s17, 3
          %s182 = smul.addr %s181, 64
          %s183 = scalar_lea.hbm %s0, %s182
          %s184 = sshll.u32 %s177, 4
          %s185 = int_to_ptr.vmem [resolvable:$true] %s184
          %190 = dma.hbm_to_vmem [thread:$0]  %s183, 192, %s185, %s174, 64, 64, 4
        $region32: #{tpu_custom_call.1} parent=27 // pred_fallthru
          _
      $region28: #{tpu_custom_call.1} parent=5 // pred_fallthru
        _
      %p191 = scmp.le.s32.totalorder 1, %s17
      %p192 = scmp.lt.s32.totalorder %s17, 3
      %p193 = pnand %p191, %p192
      %p194 = pneg %p193
      // Predicated region
      $region33: #{tpu_custom_call.1} parent=5 // pred_check
        _
      $region34: #{tpu_custom_call.1} parent=5 // pred_check_branch
        %196 = sbr.rel (%p193) target = $region36
      $region35: #{tpu_custom_call.1} parent=5 // pred_region
        %s197 = ssub.s32 %s17, 1
        %s198 = sand.u32 %s30, 1
        %s199 = scalar_lea.sflag [#allocation3], %s198
        %s200 = sand.u32 %s30, 1
        %s201 = smul.addr %s200, 12
        %s202 = scalar_lea.vmem [#allocation2], %s201
        // Predicated region
        $region37: #{tpu_custom_call.1} parent=35 // pred_check
          %p203 = pneg %p43
        $region38: #{tpu_custom_call.1} parent=35 // pred_check_branch
          %205 = sbr.rel (%p203) target = $region40
        $region39: #{tpu_custom_call.1} parent=35 // pred_region
          %206 = dma.done %s199, 192
        $region40: #{tpu_custom_call.1} parent=35 // pred_fallthru
          _
        // Predicated region
        $region41: #{tpu_custom_call.1} parent=35 // pred_check
          %p207 = pneg %p64
        $region42: #{tpu_custom_call.1} parent=35 // pred_check_branch
          %209 = sbr.rel (%p207) target = $region44
        $region43: #{tpu_custom_call.1} parent=35 // pred_region
          %210 = dma.done [#allocation6], 1024
        $region44: #{tpu_custom_call.1} parent=35 // pred_fallthru
          _
        %s211 = sand.u32 %s30, 1
        %s212 = scalar_lea.sflag [#allocation3], %s211
        %s213 = sand.u32 %s30, 1
        %s214 = smul.addr %s213, 12
        %s215 = scalar_lea.vmem [#allocation2], %s214
        %p216 = pneg %p43
        %p217 = pneg %p40
        %p218 = pneg %p64
        %p219 = pneg %p61
        %p220 = pneg %p85
        %p221 = pneg %p82
        %p222 = pneg %p106
        %p223 = pneg %p103
        %p224 = pneg %p132
        %p225 = pneg %p129
        %s226 = sand.u32 %s119, 1
        %s227 = scalar_lea.sflag [#allocation4], %s226
        %s228 = sand.u32 %s119, 1
        %s229 = scalar_lea.vmem [#allocation7], %s228
        %v231 = vld [vmem:[%s202] sm:$0xf]
        %v232 = vld [vmem:[%s202 + $0x4] sm:$0xf]
        %v233 = vld [vmem:[%s202 + $0x8] sm:$0xf]
        %v234 = vld [vmem:[#allocation5] sm:$0xf]
        %v235 = vld [vmem:[#allocation5 + $0x4] sm:$0xf]
        %v236 = vld [vmem:[#allocation5 + $0x8] sm:$0xf]
        %v237 = vld [vmem:[#allocation5 + $0xc] sm:$0xf]
        %s238 = scalar_lea.vmem [#allocation5], 16
        %v239 = vld [vmem:[%s238] sm:$0xf]
        %v240 = vld [vmem:[%s238 + $0x4] sm:$0xf]
        %v241 = vld [vmem:[%s238 + $0x8] sm:$0xf]
        %v242 = vld [vmem:[%s238 + $0xc] sm:$0xf]
        %v246 = vunpack.c.l.b16 %v231
        %v247 = vunpack.c.l.b16 %v232
        %v248 = vunpack.c.l.b16 %v233
        %v249 = vpack.c.b16 %v247, %v246
        %v250 = vpack.c.b16 %v248, %v248
        %vm251 = vsmask.f32 7424
        %v253 = vshrl.u32 %v249, 16
        %v255 = vshll.u32 %v249, 16
        %v257 = vrot.slane %v255, 1
        %v258 = vor.u32 %v253, %v257
        %v260 = vshll.u32 %v250, 16
        %v262 = vrot.slane %v260, 1
        %v263 = vsel %vm251, %v258, %v262
        %v268 = vunpack.c.l.b16 %v239
        %v269 = vunpack.c.l.b16 %v240
        %v270 = vunpack.c.l.b16 %v241
        %v271 = vunpack.c.l.b16 %v242
        %v272 = vpack.c.b16 %v269, %v268
        %v273 = vpack.c.b16 %v271, %v270
        %vm276 = vcmask 261120
        %v278 = vsel %vm276, %v263, 0
        %280 = vmatprep.subr.bf16.mxu0 0
        %281 = vmatpush1.bf16.msra.mxu0 %v272
        %282 = vmatprep.subr.bf16.mxu0 0
        %283 = vmatpush1.bf16.msra.mxu0 %v273
        %284 = vmatprep.subr.bf16.mxu0 0
        %285 = vmatpush1.bf16.msra.mxu0 0
        %286 = vmatprep.subr.bf16.mxu0 0
        %287 = vmatpush1.bf16.msra.mxu0 0
        %288 = vmatprep.subr.bf16.mxu0 0
        %289 = vmatpush1.bf16.msra.mxu0 0
        %290 = vmatprep.subr.bf16.mxu0 0
        %291 = vmatpush1.bf16.msra.mxu0 0
        %292 = vmatprep.subr.bf16.mxu0 0
        %293 = vmatpush1.bf16.msra.mxu0 0
        %294 = vmatprep.subr.bf16.mxu0 0
        %295 = vmatpush1.bf16.msra.mxu0 0
        %296 = vmatprep.subr.bf16.mxu0 0
        %297 = vmatpush1.bf16.msra.mxu0 0
        %298 = vmatprep.subr.bf16.mxu0 0
        %299 = vmatpush1.bf16.msra.mxu0 0
        %300 = vmatprep.subr.bf16.mxu0 0
        %301 = vmatpush1.bf16.msra.mxu0 0
        %302 = vmatprep.subr.bf16.mxu0 0
        %303 = vmatpush1.bf16.msra.mxu0 0
        %304 = vmatprep.subr.bf16.mxu0 0
        %305 = vmatpush1.bf16.msra.mxu0 0
        %306 = vmatprep.subr.bf16.mxu0 0
        %307 = vmatpush1.bf16.msra.mxu0 0
        %308 = vmatprep.subr.bf16.mxu0 0
        %309 = vmatpush1.bf16.msra.mxu0 0
        %310 = vmatprep.subr.bf16.mxu0 0
        %311 = vmatpush1.bf16.msra.mxu0 0
        %312 = vmatprep.mubr.bf16.mxu0 0
        %313 = vmatmul.mubr.bf16.gmra.mrb[0].mxu0 %v278
        %v314 = vpop.f32.mrb[0].mxu0
        %v315 = vadd.f32 0.0, %v314
        %v316 = vpop.f32.mrb[0].mxu0
        %v317 = vpop.f32.mrb[0].mxu0
        %v318 = vadd.f32 0.0, %v317
        %v319 = vpop.f32.mrb[0].mxu0
        %320 = vdwg.mxu0
        %v325 = vunpack.c.l.b16 %v234
        %v326 = vunpack.c.l.b16 %v235
        %v327 = vunpack.c.l.b16 %v236
        %v328 = vunpack.c.l.b16 %v237
        %v329 = vpack.c.b16 %v326, %v325
        %v330 = vpack.c.b16 %v328, %v327
        %v333 = vsel %vm276, %v249, 0
        %335 = vmatprep.subr.bf16.mxu0 0
        %336 = vmatpush1.bf16.msra.mxu0 %v329
        %337 = vmatprep.subr.bf16.mxu0 0
        %338 = vmatpush1.bf16.msra.mxu0 %v330
        %339 = vmatprep.subr.bf16.mxu0 0
        %340 = vmatpush1.bf16.msra.mxu0 0
        %341 = vmatprep.subr.bf16.mxu0 0
        %342 = vmatpush1.bf16.msra.mxu0 0
        %343 = vmatprep.subr.bf16.mxu0 0
        %344 = vmatpush1.bf16.msra.mxu0 0
        %345 = vmatprep.subr.bf16.mxu0 0
        %346 = vmatpush1.bf16.msra.mxu0 0
        %347 = vmatprep.subr.bf16.mxu0 0
        %348 = vmatpush1.bf16.msra.mxu0 0
        %349 = vmatprep.subr.bf16.mxu0 0
        %350 = vmatpush1.bf16.msra.mxu0 0
        %351 = vmatprep.subr.bf16.mxu0 0
        %352 = vmatpush1.bf16.msra.mxu0 0
        %353 = vmatprep.subr.bf16.mxu0 0
        %354 = vmatpush1.bf16.msra.mxu0 0
        %355 = vmatprep.subr.bf16.mxu0 0
        %356 = vmatpush1.bf16.msra.mxu0 0
        %357 = vmatprep.subr.bf16.mxu0 0
        %358 = vmatpush1.bf16.msra.mxu0 0
        %359 = vmatprep.subr.bf16.mxu0 0
        %360 = vmatpush1.bf16.msra.mxu0 0
        %361 = vmatprep.subr.bf16.mxu0 0
        %362 = vmatpush1.bf16.msra.mxu0 0
        %363 = vmatprep.subr.bf16.mxu0 0
        %364 = vmatpush1.bf16.msra.mxu0 0
        %365 = vmatprep.subr.bf16.mxu0 0
        %366 = vmatpush1.bf16.msra.mxu0 0
        %367 = vmatprep.mubr.bf16.mxu0 0
        %368 = vmatmul.mubr.bf16.gmra.mrb[0].mxu0 %v333
        %v369 = vpop.f32.mrb[0].mxu0
        %v370 = vadd.f32 %v315, %v369
        %v371 = vpop.f32.mrb[0].mxu0
        %v372 = vpop.f32.mrb[0].mxu0
        %v373 = vadd.f32 %v318, %v372
        %v374 = vpop.f32.mrb[0].mxu0
        %375 = vdwg.mxu0
        %s376 = scalar_lea.vmem [#allocation5], 32
        %v377 = vld [vmem:[%s376] sm:$0xf]
        %v378 = vld [vmem:[%s376 + $0x4] sm:$0xf]
        %v379 = vld [vmem:[%s376 + $0x8] sm:$0xf]
        %v380 = vld [vmem:[%s376 + $0xc] sm:$0xf]
        %vm381 = vcmask 1046528
        %v382 = vrot.slane %v249, 1
        %v383 = vrot.slane %v250, 1
        %v384 = vsel %vm381, %v382, %v383
        %v389 = vunpack.c.l.b16 %v377
        %v390 = vunpack.c.l.b16 %v378
        %v391 = vunpack.c.l.b16 %v379
        %v392 = vunpack.c.l.b16 %v380
        %v393 = vpack.c.b16 %v390, %v389
        %v394 = vpack.c.b16 %v392, %v391
        %v398 = vsel %vm276, %v384, 0
        %400 = vmatprep.subr.bf16.mxu0 0
        %401 = vmatpush1.bf16.msra.mxu0 %v393
        %402 = vmatprep.subr.bf16.mxu0 0
        %403 = vmatpush1.bf16.msra.mxu0 %v394
        %404 = vmatprep.subr.bf16.mxu0 0
        %405 = vmatpush1.bf16.msra.mxu0 0
        %406 = vmatprep.subr.bf16.mxu0 0
        %407 = vmatpush1.bf16.msra.mxu0 0
        %408 = vmatprep.subr.bf16.mxu0 0
        %409 = vmatpush1.bf16.msra.mxu0 0
        %410 = vmatprep.subr.bf16.mxu0 0
        %411 = vmatpush1.bf16.msra.mxu0 0
        %412 = vmatprep.subr.bf16.mxu0 0
        %413 = vmatpush1.bf16.msra.mxu0 0
        %414 = vmatprep.subr.bf16.mxu0 0
        %415 = vmatpush1.bf16.msra.mxu0 0
        %416 = vmatprep.subr.bf16.mxu0 0
        %417 = vmatpush1.bf16.msra.mxu0 0
        %418 = vmatprep.subr.bf16.mxu0 0
        %419 = vmatpush1.bf16.msra.mxu0 0
        %420 = vmatprep.subr.bf16.mxu0 0
        %421 = vmatpush1.bf16.msra.mxu0 0
        %422 = vmatprep.subr.bf16.mxu0 0
        %423 = vmatpush1.bf16.msra.mxu0 0
        %424 = vmatprep.subr.bf16.mxu0 0
        %425 = vmatpush1.bf16.msra.mxu0 0
        %426 = vmatprep.subr.bf16.mxu0 0
        %427 = vmatpush1.bf16.msra.mxu0 0
        %428 = vmatprep.subr.bf16.mxu0 0
        %429 = vmatpush1.bf16.msra.mxu0 0
        %430 = vmatprep.subr.bf16.mxu0 0
        %431 = vmatpush1.bf16.msra.mxu0 0
        %432 = vmatprep.mubr.bf16.mxu0 0
        %433 = vmatmul.mubr.bf16.gmra.mrb[0].mxu0 %v398
        %v434 = vpop.f32.mrb[0].mxu0
        %v435 = vadd.f32 0.0, %v434
        %v436 = vpop.f32.mrb[0].mxu0
        %v437 = vpop.f32.mrb[0].mxu0
        %v438 = vadd.f32 0.0, %v437
        %v439 = vpop.f32.mrb[0].mxu0
        %440 = vdwg.mxu0
        %v441 = vadd.f32 %v370, %v435
        %v442 = vadd.f32 %v373, %v438
        %s443 = scalar_lea.vmem [#allocation5], 48
        %v444 = vld [vmem:[%s443] sm:$0xf]
        %v445 = vld [vmem:[%s443 + $0x4] sm:$0xf]
        %v446 = vld [vmem:[%s443 + $0x8] sm:$0xf]
        %v447 = vld [vmem:[%s443 + $0xc] sm:$0xf]
        %vm448 = vsmask.f32 6400
        %v449 = vrot.slane %v253, 1
        %v450 = vrot.slane %v255, 2
        %v451 = vor.u32 %v449, %v450
        %v452 = vshrl.u32 %v250, 16
        %v454 = vrot.slane %v452, 1
        %v455 = vrot.slane %v260, 2
        %v456 = vor.u32 %v454, %v455
        %v457 = vsel %vm448, %v451, %v456
        %v462 = vunpack.c.l.b16 %v444
        %v463 = vunpack.c.l.b16 %v445
        %v464 = vunpack.c.l.b16 %v446
        %v465 = vunpack.c.l.b16 %v447
        %v466 = vpack.c.b16 %v463, %v462
        %v467 = vpack.c.b16 %v465, %v464
        %v471 = vsel %vm276, %v457, 0
        %473 = vmatprep.subr.bf16.mxu0 0
        %474 = vmatpush1.bf16.msra.mxu0 %v466
        %475 = vmatprep.subr.bf16.mxu0 0
        %476 = vmatpush1.bf16.msra.mxu0 %v467
        %477 = vmatprep.subr.bf16.mxu0 0
        %478 = vmatpush1.bf16.msra.mxu0 0
        %479 = vmatprep.subr.bf16.mxu0 0
        %480 = vmatpush1.bf16.msra.mxu0 0
        %481 = vmatprep.subr.bf16.mxu0 0
        %482 = vmatpush1.bf16.msra.mxu0 0
        %483 = vmatprep.subr.bf16.mxu0 0
        %484 = vmatpush1.bf16.msra.mxu0 0
        %485 = vmatprep.subr.bf16.mxu0 0
        %486 = vmatpush1.bf16.msra.mxu0 0
        %487 = vmatprep.subr.bf16.mxu0 0
        %488 = vmatpush1.bf16.msra.mxu0 0
        %489 = vmatprep.subr.bf16.mxu0 0
        %490 = vmatpush1.bf16.msra.mxu0 0
        %491 = vmatprep.subr.bf16.mxu0 0
        %492 = vmatpush1.bf16.msra.mxu0 0
        %493 = vmatprep.subr.bf16.mxu0 0
        %494 = vmatpush1.bf16.msra.mxu0 0
        %495 = vmatprep.subr.bf16.mxu0 0
        %496 = vmatpush1.bf16.msra.mxu0 0
        %497 = vmatprep.subr.bf16.mxu0 0
        %498 = vmatpush1.bf16.msra.mxu0 0
        %499 = vmatprep.subr.bf16.mxu0 0
        %500 = vmatpush1.bf16.msra.mxu0 0
        %501 = vmatprep.subr.bf16.mxu0 0
        %502 = vmatpush1.bf16.msra.mxu0 0
        %503 = vmatprep.subr.bf16.mxu0 0
        %504 = vmatpush1.bf16.msra.mxu0 0
        %505 = vmatprep.mubr.bf16.mxu0 0
        %506 = vmatmul.mubr.bf16.gmra.mrb[0].mxu0 %v471
        %v507 = vpop.f32.mrb[0].mxu0
        %v508 = vadd.f32 0.0, %v507
        %v509 = vpop.f32.mrb[0].mxu0
        %v510 = vpop.f32.mrb[0].mxu0
        %v511 = vadd.f32 0.0, %v510
        %v512 = vpop.f32.mrb[0].mxu0
        %513 = vdwg.mxu0
        %v514 = vadd.f32 %v441, %v508
        %v515 = vadd.f32 %v442, %v511
        %v516 = vlaneseq
        %v517 = vshrl.u32 %v516, 7
        %v518 = vadd.s32 %v517, 8
        %v519 = vld [vmem:[%s3] sm:$0x1]
        %v520 = vlaneseq
        %v521 = vshrl.u32 %v520, 7
        %v522 = vsub.s32 0, %v521
        %v523 = vrot.slane %v519, %v522
        %vm524 = vcmp.lt.s32.totalorder %v517, %v523
        %vm525 = vcmp.lt.s32.totalorder %v518, %v523
        %v526 = vsel %vm524, 0.0, -1e+30
        %v527 = vsel %vm525, 0.0, -1e+30
        %v528 = vadd.f32 %v514, %v526
        %v529 = vadd.f32 %v515, %v527
        %v530 = vmax.f32 %v528, %v529
        %v531 = vrot.slane %v530, 4
        %v532 = vmax.f32 %v530, %v531
        %v533 = vrot.slane %v532, 2
        %v534 = vmax.f32 %v532, %v533
        %v535 = vrot.slane %v534, 1
        %v536 = vmax.f32 %v534, %v535
        %v537 = vld [vmem:[%s2] sm:$0x1]
        %v538 = vadd.f32 %v536, %v537
        %v539 = vmax.f32 %v538, 0.0
        %540 = vst [vmem:[%s229] sm:$0x1] %v539
        %s541 = sand.u32 %s119, 1
        %s542 = scalar_lea.sflag [#allocation4], %s541
        %s543 = sand.u32 %s119, 1
        %s544 = scalar_lea.vmem [#allocation7], %s543
        // Predicated region
        $region45: #{tpu_custom_call.1} parent=35 // pred_check
          %p545 = pneg %p129
        $region46: #{tpu_custom_call.1} parent=35 // pred_check_branch
          %547 = sbr.rel (%p545) target = $region48
        $region47: #{tpu_custom_call.1} parent=35 // pred_region
          %s549 = ssub.s32 16, 16
          %550 = vsyncadd %s542, %s549
          %s551 = smul.addr %s22, 16
          %s552 = scalar_lea.hbm %s4, %s551
          %s554 = sshll.u32 %s544, 4
          %s555 = int_to_ptr.vmem [resolvable:$true] %s554
          %557 = dma.vmem_to_hbm [thread:$0]  %s555, 16, %s552, %s542
        $region48: #{tpu_custom_call.1} parent=35 // pred_fallthru
          _
      $region36: #{tpu_custom_call.1} parent=5 // pred_fallthru
        _
      %p558 = scmp.le.s32.totalorder 2, %s17
      // Predicated region
      $region49: #{tpu_custom_call.1} parent=5 // pred_check
        %p559 = pneg %p558
      $region50: #{tpu_custom_call.1} parent=5 // pred_check_branch
        %561 = sbr.rel (%p559) target = $region52
      $region51: #{tpu_custom_call.1} parent=5 // pred_region
        %s562 = ssub.s32 %s17, 2
        // Predicated region
        $region53: #{tpu_custom_call.1} parent=51 // pred_check
          %p563 = pneg %p135
        $region54: #{tpu_custom_call.1} parent=51 // pred_check_branch
          %565 = sbr.rel (%p563) target = $region56
        $region55: #{tpu_custom_call.1} parent=51 // pred_region
          %s566 = sand.u32 %s120, 1
          %s567 = scalar_lea.sflag [#allocation4], %s566
          %s568 = sand.u32 %s120, 1
          %s569 = scalar_lea.vmem [#allocation7], %s568
          %570 = dma.done %s567, 16
        $region56: #{tpu_custom_call.1} parent=51 // pred_fallthru
          _
      $region52: #{tpu_custom_call.1} parent=5 // pred_fallthru
        _
    $region6: #{tpu_custom_call.1} parent=1 // loop_footer
      %s21 = sadd.s32 1, %s17
    $region7: #{tpu_custom_call.1} parent=1 // loop_footer_branch
      %16 = sbr.rel target = $region3
    $region8: #{tpu_custom_call.1} parent=1 // loop_exit
      _
    %571 = vsyncpa [#allocation3], 1
    %s572 = scalar_lea.sflag [#allocation3], 1
    %573 = vsyncpa %s572, 1
    %574 = vsyncpa [#allocation6], 1
    %575 = vsyncpa [#allocation4], 1
    %s576 = scalar_lea.sflag [#allocation4], 1
    %577 = vsyncpa %s576, 1

</llo_original>
